<compile_context>
chip_gen: v5e
topology: v5e:2x2
jax: 0.10.0
libtpu: 0.0.40
codegen_flags: <defaults>
</compile_context>

<pallas_src>
import jax
import jax.numpy as jnp
import numpy as np
from jax.experimental import pallas as pl
from jax.experimental.pallas import tpu as pltpu

LANE = 128
SUBLANE = 8


def _round_up(x, m):
    return (x + m - 1) // m * m


def _vmem_config():
    """Return (tile-sizing budget, compiler vmem limit, min batch grid steps)."""
    try:
        kind = jax.devices()[0].device_kind.lower()
    except Exception:
        kind = ""
    if any(t in kind for t in ("v4", "v5", "v6")):
        # 128 MiB physical VMEM per core: big tiles, fewer grid steps.
        return 96 << 20, 112 << 20, 1
    if "v7" in kind:
        # 64 MiB physical per TC, 2 TCs/chip: size per-core with headroom and
        # make sure the "parallel" batch axis can land work on both cores.
        return 40 << 20, 48 << 20, 2
    # Unknown hardware: conservative defaults known to compile everywhere.
    return 24 << 20, 32 << 20, 1


def _plan_tiles(B, D_in, H, D_out_blk, out_bytes, budget, min_steps):
    """Pick (tile_b, tile_k) so double-buffered tiles + resident weights fit."""
    B_ceil = _round_up(max(B, 1), SUBLANE)

    def resident(tile_k):
        # Every input BlockSpec gets 2 VMEM buffers by default, even with a
        # constant index_map, so count the weights twice.
        return 2 * (tile_k * H * 2            # W1 K-tile (bf16)
                    + H * 4                   # b1 (f32)
                    + H * D_out_blk * 2       # W2 (bf16)
                    + D_out_blk * 4)          # b2 (f32)

    def per_row(tile_k):
        return (2 * tile_k * 2                # x tile, double-buffered (bf16)
                + 2 * D_out_blk * out_bytes   # out tile, double-buffered
                + H * 4                       # f32 accumulator scratch
                + H * 6 + D_out_blk * 4)      # l1/a1/l2 intermediates headroom

    # Shrink the K tile until the resident weights leave room for batch rows.
    tile_k = D_in
    while tile_k > LANE and resident(tile_k) + SUBLANE * per_row(tile_k) > budget:
        tile_k = max(LANE, _round_up(tile_k // 2, LANE))
    # TODO(synk): if H * D_out itself cannot fit VMEM, W2 would also need an
    # output-feature grid axis; not needed at these sizes.

    tile_b = (budget - resident(tile_k)) // per_row(tile_k)
    tile_b = max(SUBLANE, min(tile_b, B_ceil, 4096))
    # v7x: split the batch across both TensorCores when it would fit one tile.
    tile_b = min(tile_b, _round_up(pl.cdiv(B_ceil, min_steps), SUBLANE))
    if tile_b >= 512:
        tile_b = (tile_b // 256) * 256        # fill the 256-wide MXU M dim
    else:
        tile_b = max(SUBLANE, (tile_b // SUBLANE) * SUBLANE)
    return tile_b, tile_k


def mlp_kernel(x_ref, w1_ref, b1_ref, w2_ref, b2_ref, out_ref, acc_ref):
    k = pl.program_id(1)

    @pl.when(k == 0)
    def _():
        acc_ref[...] = jnp.zeros_like(acc_ref)

    # Layer-1 partial product for this K tile: bf16 MXU, f32 accumulation.
    acc_ref[...] += jnp.dot(x_ref[...], w1_ref[...],
                            preferred_element_type=jnp.float32)

    @pl.when(k == pl.num_programs(1) - 1)
    def _():
        l1 = acc_ref[...] + b1_ref[...]                     # f32
        # Exact sigmoid for the hidden layer (error would be amplified by the
        # second matmul); exp lands on the EUP slot either way.
        a1 = 1.0 / (1.0 + jnp.exp(-l1))
        l2 = jnp.dot(a1.astype(w2_ref.dtype), w2_ref[...],
                     preferred_element_type=jnp.float32) + b2_ref[...]
        # Final sigmoid: approx reciprocal is fine here (not amplified).
        y = pl.reciprocal(1.0 + jnp.exp(-l2), approx=True)
        out_ref[...] = y.astype(out_ref.dtype)


def net_forward(x, w1, b1, w2, b2, *, out_dtype=None):
    """Pallas forward pass: sigmoid(sigmoid(x @ W1 + b1) @ W2 + b2)."""
    B, D_in = x.shape
    H = w1.shape[1]
    D_out = w2.shape[1]
    out_dtype = np.dtype(x.dtype if out_dtype is None else out_dtype)
    out_bytes = out_dtype.itemsize

    budget, vmem_limit, min_steps = _vmem_config()

    # Lane-pad the output features only when overhead is small (D_out >= 64);
    # for small D_out a full-dim block is legal and padding to 128 lanes would
    # multiply HBM writeback on a mem-bound kernel.
    D_out_blk = D_out
    if D_out >= 64 and D_out % LANE != 0:
        D_out_blk = _round_up(D_out, LANE)
        w2 = jnp.pad(w2, ((0, 0), (0, D_out_blk - D_out)))
        b2 = jnp.pad(b2, ((0, 0), (0, D_out_blk - D_out)))

    tile_b, tile_k = _plan_tiles(B, D_in, H, D_out_blk, out_bytes, budget, min_steps)

    # bf16 MXU path (f32 accumulation happens in-kernel).
    x_b = x.astype(jnp.bfloat16)
    w1_b = w1.astype(jnp.bfloat16)
    w2_b = w2.astype(jnp.bfloat16)
    b1_f = b1.astype(jnp.float32)
    b2_f = b2.astype(jnp.float32)

    # If the K axis is tiled, zero-pad D_in so every K block is fully valid.
    D_in_p = _round_up(D_in, tile_k)
    if D_in_p != D_in:
        x_b = jnp.pad(x_b, ((0, 0), (0, D_in_p - D_in)))
        w1_b = jnp.pad(w1_b, ((0, D_in_p - D_in), (0, 0)))

    grid = (pl.cdiv(B, tile_b), D_in_p // tile_k)

    cost = pl.CostEstimate(
        flops=2 * B * (D_in * H + H * D_out_blk),
        transcendentals=B * (H + D_out_blk),
        bytes_accessed=(2 * B * D_in + 2 * D_in * H + 4 * H
                        + 2 * H * D_out_blk + 4 * D_out_blk
                        + out_bytes * B * D_out_blk),
    )

    out = pl.pallas_call(
        mlp_kernel,
        out_shape=jax.ShapeDtypeStruct((B, D_out_blk), out_dtype),
        grid=grid,
        in_specs=[
            pl.BlockSpec((tile_b, tile_k), lambda i, k: (i, k)),   # x: streamed
            pl.BlockSpec((tile_k, H), lambda i, k: (k, 0)),        # W1: K-tiled, resident over batch
            pl.BlockSpec((1, H), lambda i, k: (0, 0)),             # b1: resident
            pl.BlockSpec((H, D_out_blk), lambda i, k: (0, 0)),     # W2: resident
            pl.BlockSpec((1, D_out_blk), lambda i, k: (0, 0)),     # b2: resident
        ],
        out_specs=pl.BlockSpec((tile_b, D_out_blk), lambda i, k: (i, 0)),
        scratch_shapes=[pltpu.VMEM((tile_b, H), jnp.float32)],     # layer-1 f32 accumulator
        compiler_params=pltpu.CompilerParams(
            dimension_semantics=("parallel", "arbitrary"),
            vmem_limit_bytes=vmem_limit,
        ),
        cost_estimate=cost,
    )(x_b, w1_b, b1_f, w2_b, b2_f)

    return out[:, :D_out] if D_out_blk != D_out else out


def init_params(key, d_in, h, d_out):
    """Deterministic init mimicking nn.Linear's U(-1/sqrt(fan_in), 1/sqrt(fan_in))."""
    k1, k2, k3, k4 = jax.random.split(key, 4)
    bound1 = 1.0 / jnp.sqrt(d_in)
    bound2 = 1.0 / jnp.sqrt(h)
    # Stored transposed relative to PyTorch ([in, out] instead of [out, in]).
    w1 = jax.random.uniform(k1, (d_in, h), jnp.float32, -bound1, bound1)
    b1 = jax.random.uniform(k2, (1, h), jnp.float32, -bound1, bound1)
    w2 = jax.random.uniform(k3, (h, d_out), jnp.float32, -bound2, bound2)
    b2 = jax.random.uniform(k4, (1, d_out), jnp.float32, -bound2, bound2)
    return w1, b1, w2, b2


if __name__ == "__main__":
    B, D_in, H, D_out = 8, 16, 32, 8

    key = jax.random.PRNGKey(0)
    kx, kp = jax.random.split(key)
    x = jax.random.normal(kx, (B, D_in), jnp.float32)
    w1, b1, w2, b2 = init_params(kp, D_in, H, D_out)

    out = jax.block_until_ready(net_forward(x, w1, b1, w2, b2))

    # Pure-JAX f32 reference; kernel uses the bf16 MXU path + approx reciprocal
    # on the final sigmoid, so tolerance is accordingly looser.
    ref = jax.nn.sigmoid(jax.nn.sigmoid(x @ w1 + b1) @ w2 + b2)
    assert out.shape == (B, D_out)
    assert jnp.allclose(out, ref, atol=1e-2, rtol=1e-2), float(jnp.max(jnp.abs(out - ref)))

    print("KERNEL_OK")
</pallas_src>

<mosaic_0001>
module attributes {stable_mosaic.version = 11 : i64} {
  func.func @mlp_kernel(%arg0: i32, %arg1: i32, %arg2: memref<8x16xbf16, #tpu.memory_space<vmem>>, %arg3: memref<16x32xbf16, #tpu.memory_space<vmem>>, %arg4: memref<1x32xf32, #tpu.memory_space<vmem>>, %arg5: memref<32x8xbf16, #tpu.memory_space<vmem>>, %arg6: memref<1x8xf32, #tpu.memory_space<vmem>>, %arg7: memref<8x8xf32, #tpu.memory_space<vmem>>, %arg8: memref<8x32xf32, #tpu.memory_space<vmem>>) attributes {dimension_semantics = [#tpu.dimension_semantics<parallel>, #tpu.dimension_semantics<arbitrary>], iteration_bounds = array<i64: 1, 1>, scalar_prefetch = 0 : i64, scratch_operands = 1 : i64, tpu.core_type = #tpu.core_type<tc>, window_params = [{transform_indices = @transform_0, window_bounds = array<i64: 8, 16>}, {transform_indices = @transform_1, window_bounds = array<i64: 16, 32>}, {pipeline_mode = #tpu.pipeline_mode<synchronous>, transform_indices = @transform_2, window_bounds = array<i64: 1, 32>}, {pipeline_mode = #tpu.pipeline_mode<synchronous>, transform_indices = @transform_3, window_bounds = array<i64: 32, 8>}, {pipeline_mode = #tpu.pipeline_mode<synchronous>, transform_indices = @transform_4, window_bounds = array<i64: 1, 8>}, {transform_indices = @transform_5, window_bounds = array<i64: 8, 8>}]} {
    %c0_i32 = arith.constant 0 : i32
    %0 = arith.cmpi eq, %arg1, %c0_i32 : i32
    %1 = arith.extui %0 : i1 to i32
    %c0_i32_0 = arith.constant 0 : i32
    %2 = arith.cmpi ne, %1, %c0_i32_0 : i32
    scf.if %2 {
      %cst_10 = arith.constant 0.000000e+00 : f32
      %12 = vector.broadcast %cst_10 : f32 to vector<8x32xf32>
      %c0_11 = arith.constant 0 : index
      %c0_12 = arith.constant 0 : index
      %13 = vector.load %arg8[%c0_11, %c0_12] : memref<8x32xf32, #tpu.memory_space<vmem>>, vector<8x32xf32>
      tpu.vector_store %arg8[%c0_11, %c0_12], %12 {strides = array<i32>} : memref<8x32xf32, #tpu.memory_space<vmem>>, vector<8x32xf32>,
    } else {
    }
    %c0 = arith.constant 0 : index
    %c0_1 = arith.constant 0 : index
    %3 = vector.load %arg8[%c0, %c0_1] : memref<8x32xf32, #tpu.memory_space<vmem>>, vector<8x32xf32>
    %c0_2 = arith.constant 0 : index
    %c0_3 = arith.constant 0 : index
    %4 = vector.load %arg2[%c0_2, %c0_3] : memref<8x16xbf16, #tpu.memory_space<vmem>>, vector<8x16xbf16>
    %c0_4 = arith.constant 0 : index
    %c0_5 = arith.constant 0 : index
    %5 = vector.load %arg3[%c0_4, %c0_5] : memref<16x32xbf16, #tpu.memory_space<vmem>>, vector<16x32xbf16>
    %cst = arith.constant dense<0.000000e+00> : vector<8x32xf32>
    %6 = tpu.matmul %4, %5, %cst {dimension_numbers = #tpu.dot_dimension_numbers<[1], [0], [0], [1], [0, 0, 1, 1], [], []>} : vector<8x16xbf16>, vector<16x32xbf16>, vector<8x32xf32> -> vector<8x32xf32>
    %7 = arith.addf %3, %6 : vector<8x32xf32>
    %c0_6 = arith.constant 0 : index
    %c0_7 = arith.constant 0 : index
    %8 = vector.load %arg8[%c0_6, %c0_7] : memref<8x32xf32, #tpu.memory_space<vmem>>, vector<8x32xf32>
    tpu.vector_store %arg8[%c0_6, %c0_7], %7 {strides = array<i32>} : memref<8x32xf32, #tpu.memory_space<vmem>>, vector<8x32xf32>,
    %c0_i32_8 = arith.constant 0 : i32
    %9 = arith.cmpi eq, %arg1, %c0_i32_8 : i32
    %10 = arith.extui %9 : i1 to i32
    %c0_i32_9 = arith.constant 0 : i32
    %11 = arith.cmpi ne, %10, %c0_i32_9 : i32
    scf.if %11 {
      %c0_10 = arith.constant 0 : index
      %c0_11 = arith.constant 0 : index
      %12 = vector.load %arg8[%c0_10, %c0_11] : memref<8x32xf32, #tpu.memory_space<vmem>>, vector<8x32xf32>
      %c0_12 = arith.constant 0 : index
      %c0_13 = arith.constant 0 : index
      %13 = vector.load %arg4[%c0_12, %c0_13] : memref<1x32xf32, #tpu.memory_space<vmem>>, vector<1x32xf32>
      %14 = vector.broadcast %13 : vector<1x32xf32> to vector<8x32xf32>
      %15 = arith.addf %12, %14 : vector<8x32xf32>
      %cst_14 = arith.constant 0.000000e+00 : f32
      %16 = vector.broadcast %cst_14 : f32 to vector<8x32xf32>
      %17 = arith.subf %16, %15 : vector<8x32xf32>
      %18 = math.exp %17 : vector<8x32xf32>
      %cst_15 = arith.constant 1.000000e+00 : f32
      %19 = vector.broadcast %cst_15 : f32 to vector<8x32xf32>
      %20 = arith.addf %19, %18 : vector<8x32xf32>
      %cst_16 = arith.constant 1.000000e+00 : f32
      %21 = vector.broadcast %cst_16 : f32 to vector<8x32xf32>
      %22 = arith.divf %21, %20 : vector<8x32xf32>
      %23 = arith.truncf %22 : vector<8x32xf32> to vector<8x32xbf16>
      %c0_17 = arith.constant 0 : index
      %c0_18 = arith.constant 0 : index
      %24 = vector.load %arg5[%c0_17, %c0_18] : memref<32x8xbf16, #tpu.memory_space<vmem>>, vector<32x8xbf16>
      %cst_19 = arith.constant dense<0.000000e+00> : vector<8x8xf32>
      %25 = tpu.matmul %23, %24, %cst_19 {dimension_numbers = #tpu.dot_dimension_numbers<[1], [0], [0], [1], [0, 0, 1, 1], [], []>} : vector<8x32xbf16>, vector<32x8xbf16>, vector<8x8xf32> -> vector<8x8xf32>
      %c0_20 = arith.constant 0 : index
      %c0_21 = arith.constant 0 : index
      %26 = vector.load %arg6[%c0_20, %c0_21] : memref<1x8xf32, #tpu.memory_space<vmem>>, vector<1x8xf32>
      %27 = vector.broadcast %26 : vector<1x8xf32> to vector<8x8xf32>
      %28 = arith.addf %25, %27 : vector<8x8xf32>
      %cst_22 = arith.constant 0.000000e+00 : f32
      %29 = vector.broadcast %cst_22 : f32 to vector<8x8xf32>
      %30 = arith.subf %29, %28 : vector<8x8xf32>
      %31 = math.exp %30 : vector<8x8xf32>
      %cst_23 = arith.constant 1.000000e+00 : f32
      %32 = vector.broadcast %cst_23 : f32 to vector<8x8xf32>
      %33 = arith.addf %32, %31 : vector<8x8xf32>
      %34 = tpu.reciprocal %33 {approx = true} : vector<8x8xf32> -> vector<8x8xf32>
      %c0_24 = arith.constant 0 : index
      %c0_25 = arith.constant 0 : index
      %35 = vector.load %arg7[%c0_24, %c0_25] : memref<8x8xf32, #tpu.memory_space<vmem>>, vector<8x8xf32>
      tpu.vector_store %arg7[%c0_24, %c0_25], %34 {strides = array<i32>} : memref<8x8xf32, #tpu.memory_space<vmem>>, vector<8x8xf32>,
    } else {
    }
    return
  }
  func.func @transform_0(%arg0: i32, %arg1: i32) -> (i32, i32) {
    %c0_i32 = arith.constant 0 : i32
    return %arg0, %arg1 : i32, i32
  }
  func.func @transform_1(%arg0: i32, %arg1: i32) -> (i32, i32) {
    %c0_i32 = arith.constant 0 : i32
    %c0_i32_0 = arith.constant 0 : i32
    return %arg1, %c0_i32 : i32, i32
  }
  func.func @transform_2(%arg0: i32, %arg1: i32) -> (i32, i32) {
    %c0_i32 = arith.constant 0 : i32
    %c0_i32_0 = arith.constant 0 : i32
    %c0_i32_1 = arith.constant 0 : i32
    return %c0_i32, %c0_i32_0 : i32, i32
  }
  func.func @transform_3(%arg0: i32, %arg1: i32) -> (i32, i32) {
    %c0_i32 = arith.constant 0 : i32
    %c0_i32_0 = arith.constant 0 : i32
    %c0_i32_1 = arith.constant 0 : i32
    return %c0_i32, %c0_i32_0 : i32, i32
  }
  func.func @transform_4(%arg0: i32, %arg1: i32) -> (i32, i32) {
    %c0_i32 = arith.constant 0 : i32
    %c0_i32_0 = arith.constant 0 : i32
    %c0_i32_1 = arith.constant 0 : i32
    return %c0_i32, %c0_i32_0 : i32, i32
  }
  func.func @transform_5(%arg0: i32, %arg1: i32) -> (i32, i32) {
    %c0_i32 = arith.constant 0 : i32
    %c0_i32_0 = arith.constant 0 : i32
    return %arg0, %c0_i32 : i32, i32
  }
}

</mosaic_0001>

<llo_original>
// kernel: tpu_custom_call.1
$region0: #{tpu_custom_call.1}
  #allocation0 [shape = 'u32[]', space=smem, size = 0x4, offset = 0x4, fixed_abs, tag = 'smem constant byte address 0x4 - core index']
  #allocation1 [shape = 'u32[72,128]{1,0:T(1,128)}', space=vmem, size = 0x9000, scoped, tag = 'internal scratch']
  #allocation2 [shape = 'f32[8,32]{1,0:T(8,128)}', space=vmem, size = 0x1000, scoped, tag = 'scratch operand']
  %s0 = inlined_call_operand.vmem [shape: bf16[8,16], index: 0, kind: input, shape index: {}]
  %s1 = inlined_call_operand.vmem [shape: bf16[16,32], index: 1, kind: input, shape index: {}]
  %s2 = inlined_call_operand.vmem [shape: f32[1,32], index: 2, kind: input, shape index: {}]
  %s3 = inlined_call_operand.vmem [shape: bf16[32,8], index: 3, kind: input, shape index: {}]
  %s4 = inlined_call_operand.vmem [shape: f32[1,8], index: 4, kind: input, shape index: {}]
  %s5 = inlined_call_operand.hbm [shape: f32[8,8], index: 5, kind: output, shape index: {}]
  %s6 = sld [smem:[#allocation0]]
  $region38: #{tpu_custom_call.1} parent=0
    _
  %s8 = ssub.s32 1, %s6
  %s9 = scalar_select 0, %s8, %s6
  $region1: #{tpu_custom_call.1} parent=0
    #allocation3 [shape = 'u8[4096]{0}', space=vmem, size = 0x1000, scoped, tag = 'output window, operand 0, single buffered']
    #allocation4 [shape = 's32[1]{0}', space=sflag, size = 0x4, scoped, tag = 'scoped memory for tpu_custom_call.1']
    %10 = vsyncpa [#allocation4], 0
    // Predicated region
    $region2: #{tpu_custom_call.1} parent=1 // pred_check
      _
    $region3: #{tpu_custom_call.1} parent=1 // pred_check_branch
      %12 = sbr.rel (0) target = $region5
    $region4: #{tpu_custom_call.1} parent=1 // pred_region
      _
    $region5: #{tpu_custom_call.1} parent=1 // pred_fallthru
      _
    // Predicated region
    $region6: #{tpu_custom_call.1} parent=1 // pred_check
      _
    $region7: #{tpu_custom_call.1} parent=1 // pred_check_branch
      %14 = sbr.rel (0) target = $region9
    $region8: #{tpu_custom_call.1} parent=1 // pred_region
      _
    $region9: #{tpu_custom_call.1} parent=1 // pred_fallthru
      _
    // Predicated region
    $region10: #{tpu_custom_call.1} parent=1 // pred_check
      _
    $region11: #{tpu_custom_call.1} parent=1 // pred_check_branch
      %16 = sbr.rel (0) target = $region13
    $region12: #{tpu_custom_call.1} parent=1 // pred_region
      _
    $region13: #{tpu_custom_call.1} parent=1 // pred_fallthru
      _
    // Predicated region
    $region14: #{tpu_custom_call.1} parent=1 // pred_check
      _
    $region15: #{tpu_custom_call.1} parent=1 // pred_check_branch
      %18 = sbr.rel (0) target = $region17
    $region16: #{tpu_custom_call.1} parent=1 // pred_region
      _
    $region17: #{tpu_custom_call.1} parent=1 // pred_fallthru
      _
    // Predicated region
    $region18: #{tpu_custom_call.1} parent=1 // pred_check
      _
    $region19: #{tpu_custom_call.1} parent=1 // pred_check_branch
      %20 = sbr.rel (0) target = $region21
    $region20: #{tpu_custom_call.1} parent=1 // pred_region
      _
    $region21: #{tpu_custom_call.1} parent=1 // pred_fallthru
      _
    %p22 = scmp.eq.s32.totalorder 0, 0
    // Predicated region
    $region22: #{tpu_custom_call.1} parent=1 // pred_check
      %p23 = pneg %p22
    $region23: #{tpu_custom_call.1} parent=1 // pred_check_branch
      %25 = sbr.rel (%p23) target = $region25
    $region24: #{tpu_custom_call.1} parent=1 // pred_region
      %vm26 = vcmask 261120
      %27 = vst.msk [vmem:[#allocation2] sm:$0xff] %vm26, 0.0
    $region25: #{tpu_custom_call.1} parent=1 // pred_fallthru
      _
    %v28 = vld [vmem:[#allocation2] sm:$0xff]
    %v29 = vld [vmem:[%s0] sm:$0xf]
    %v30 = vld [vmem:[%s1] sm:$0xf]
    %v31 = vld [vmem:[%s1 + $0x4] sm:$0xf]
    %v34 = vunpack.c.l.b16 %v30
    %v35 = vunpack.c.l.b16 %v31
    %v36 = vpack.c.b16 %v35, %v34
    %vm38 = vcmask 130048
    %v40 = vsel %vm38, %v29, 0
    %42 = vmatpush.bf16.msra.mxu0 0
    %43 = vmatpush.bf16.msra.mxu0 0
    %44 = vmatpush.bf16.msra.mxu0 0
    %45 = vmatpush.bf16.msra.mxu0 0
    %46 = vmatpush.bf16.msra.mxu0 0
    %47 = vmatpush.bf16.msra.mxu0 0
    %48 = vmatpush.bf16.msra.mxu0 0
    %49 = vmatpush.bf16.msra.mxu0 %v36
    %50 = vmatmul.bf16.gmra.mxu0 %v40
    %v51 = vpop.f32.mrf.mxu0
    %v52 = vadd.f32 0.0, %v51
    %v53 = vpop.f32.mrf.mxu0
    %54 = vdwg.mxu0
    %v55 = vadd.f32 %v28, %v52
    %vm56 = vcmask 261120
    %57 = vst.msk [vmem:[#allocation2] sm:$0xff] %vm56, %v55
    // Predicated region
    $region26: #{tpu_custom_call.1} parent=1 // pred_check
      %p58 = pneg %p22
    $region27: #{tpu_custom_call.1} parent=1 // pred_check_branch
      %60 = sbr.rel (%p58) target = $region29
    $region28: #{tpu_custom_call.1} parent=1 // pred_region
      %v61 = vld [vmem:[#allocation2] sm:$0xff]
      %v62 = vld [vmem:[%s2] sm:$0x1]
      %v64 = vperm.slane %v62, 0
      %v66 = vadd.f32 %v61, %v64
      %v67 = vsub.f32 0.0, %v66
      %v68 = vmul.f32 %v67, 1.442695
      %v69 = vpow.pop %v68
      %v70 = vadd.f32 %v69, 1.0
      %v71 = vrcp.pop %v70
      %v72 = vmul.f32 %v70, %v71
      %v73 = vsub.f32 1.0, %v72
      %v74 = vmul.f32 %v71, %v73
      %v75 = vadd.f32 %v71, %v74
      %vm76 = vweird.f32 %v70
      %vm77 = vweird.f32 %v71
      %vm78 = vmor %vm76, %vm77
      %v79 = vsel %vm78, %v71, %v75
      %v80 = vand.u32 2147483647, %v70
      %vm81 = vcmp.eq.f32.partialorder %v80, 8.507059e+37
      %v82 = vand.u32 %v70, 2147483648
      %v83 = vor.u32 1.1754944e-38, %v82
      %v84 = vsel %vm81, %v83, %v79
      %v85 = vmul.f32 1.0, %v84
      %v86 = vpack.c.bf16 %v85, %v85
      %v87 = vld [vmem:[%s3] sm:$0xf]
      %v88 = vld [vmem:[%s3 + $0x4] sm:$0xf]
      %v89 = vld [vmem:[%s3 + $0x8] sm:$0xf]
      %v90 = vld [vmem:[%s3 + $0xc] sm:$0xf]
      %v91 = vld [vmem:[%s4] sm:$0x1]
      %v93 = vperm.slane %v91, 0
      %v99 = vunpack.c.l.b16 %v87
      %v100 = vunpack.c.l.b16 %v88
      %v101 = vunpack.c.l.b16 %v89
      %v102 = vunpack.c.l.b16 %v90
      %v103 = vpack.c.b16 %v100, %v99
      %v104 = vpack.c.b16 %v102, %v101
      %v108 = vsel %vm56, %v86, 0
      %110 = vmatpush.bf16.msra.mxu0 0
      %111 = vmatpush.bf16.msra.mxu0 0
      %112 = vmatpush.bf16.msra.mxu0 0
      %113 = vmatpush.bf16.msra.mxu0 0
      %114 = vmatpush.bf16.msra.mxu0 0
      %115 = vmatpush.bf16.msra.mxu0 0
      %116 = vmatpush.bf16.msra.mxu0 %v104
      %117 = vmatpush.bf16.msra.mxu0 %v103
      %118 = vmatmul.bf16.gmra.mxu0 %v108
      %v119 = vpop.f32.mrf.mxu0
      %v120 = vadd.f32 %v93, %v119
      %v121 = vpop.f32.mrf.mxu0
      %122 = vdwg.mxu0
      %v123 = vsub.f32 0.0, %v120
      %v124 = vmul.f32 %v123, 1.442695
      %v125 = vpow.pop %v124
      %v126 = vadd.f32 %v125, 1.0
      %v127 = vrcp.pop %v126
      %vm128 = vcmask 64512
      %129 = vst.msk [vmem:[#allocation3] sm:$0xff] %vm128, %v127
    $region29: #{tpu_custom_call.1} parent=1 // pred_fallthru
      _
    // Predicated region
    $region30: #{tpu_custom_call.1} parent=1 // pred_check
      _
    $region31: #{tpu_custom_call.1} parent=1 // pred_check_branch
      %131 = sbr.rel (0) target = $region33
    $region32: #{tpu_custom_call.1} parent=1 // pred_region
      %133 = vsyncadd [#allocation4], 0
      %s135 = sshll.u32 [#allocation3], 4
      %s136 = int_to_ptr.vmem [resolvable:$true] %s135
      %s137 = sshll.u32 %s5, 4
      %s138 = int_to_ptr.hbm [resolvable:$true] %s137
      %140 = dma.vmem_to_hbm [thread:$0]  %s136, 128, %s138, [#allocation4]
    $region33: #{tpu_custom_call.1} parent=1 // pred_fallthru
      _
    // Predicated region
    $region34: #{tpu_custom_call.1} parent=1 // pred_check
      _
    $region35: #{tpu_custom_call.1} parent=1 // pred_check_branch
      %142 = sbr.rel (0) target = $region37
    $region36: #{tpu_custom_call.1} parent=1 // pred_region
      %144 = dma.done [#allocation4], 128
    $region37: #{tpu_custom_call.1} parent=1 // pred_fallthru
      _
    %145 = vsyncpa [#allocation4], 1

</llo_original>
